<compile_context>
chip_gen: v7x
topology: tpu7x:2x2x1
jax: 0.10.0
libtpu: 0.0.40
codegen_flags: <defaults>
</compile_context>

<pallas_src>
import functools

import jax
import jax.numpy as jnp
from jax.experimental import pallas as pl
from jax.experimental.pallas import tpu as pltpu

LEAKY_SLOPE = 0.01  # nn.LeakyReLU() default


def _round_up(v, m):
    return ((v + m - 1) // m) * m


def _mlp_kernel(num_layers, x_ref, *refs):
    """refs = (w0, b0, w1, b1, ..., w_{L-1}, b_{L-1}, out_ref).

    x_ref is bf16; weights are bf16 (pre-transposed, lane-padded); biases are
    f32 (1, D_out).  Matmuls run with bf16 operands + f32 accumulation; the
    bias-add and LeakyReLU epilogue stays f32 (no bf16 VPU on v5e).
    """
    out_ref = refs[-1]
    param_refs = refs[:-1]
    assert len(param_refs) == 2 * num_layers

    h = x_ref[...]                                   # bf16, straight from HBM
    # Python-unrolled layer loop (short, fixed depth) — keeps the per-layer
    # bias broadcast hoisted naturally; do NOT convert to a traced loop
    # without hoisting the broadcast.
    for i in range(num_layers):
        w = param_refs[2 * i][...]                   # bf16 (K, N), VMEM-resident
        b = param_refs[2 * i + 1][...]               # f32  (1, N)
        acc = jnp.dot(h.astype(jnp.bfloat16), w,     # no-op cast on layer 0
                      preferred_element_type=jnp.float32)
        h = acc + b
        if i < num_layers - 1:
            h = jnp.where(h > 0, h, LEAKY_SLOPE * h)  # bn identity (batch_norm=False)
    out_ref[...] = h.astype(out_ref.dtype)


def _pick_tile(B, rows_that_fit, max_tile_b):
    """Largest power-of-two row tile that fits VMEM, without over-padding B,
    keeping >=2 grid steps for large batches (v7x has 2 TensorCores/chip)."""
    t = 8
    while t * 2 <= min(rows_that_fit, max_tile_b):
        t *= 2
    # divisor-friendly: never pad more than half a tile of dead rows
    while t > 8 and _round_up(B, t) - B >= t // 2:
        t //= 2
    # give the "parallel" grid axis >=2 steps when the batch is big enough
    if _round_up(B, t) // t == 1 and t >= 512:
        t //= 2
    return t


def mlp_forward(x, weights, biases, *, max_tile_b=1024):
    """x: (B, D_in) or (B, S, D_in). weights[i]: (d_in_i, d_out_i) pre-transposed,
    biases[i]: (d_out_i,)."""
    orig_shape = x.shape
    if x.ndim == 3:
        # 3D branch of the PyTorch forward: with batch_norm=False the
        # permute/bn/permute is an identity, so flatten batch/seq.
        x = x.reshape(-1, x.shape[-1])

    B, d_in = x.shape
    num_layers = len(weights)
    d_out = weights[-1].shape[1]

    # ---- Feature dims ------------------------------------------------------
    # Hidden/output dims are lane-padded to 128 (lane-dense output stores,
    # MXU-friendly N).  The input dim keeps its true width — a (tile, d_in)
    # block equal to the full array extent is legal and avoids a separate pad
    # pass over x in HBM.  Only pad d_in when it is large and misaligned.
    d_in_eff = d_in if (d_in <= 128 or d_in % 128 == 0) else _round_up(d_in, 128)
    dims_pad = [d_in_eff] + [_round_up(w.shape[1], 128) for w in weights]

    # Pad + cast parameters once in the wrapper:
    #   weights -> bf16 (halves resident VMEM + feeds the MXU at peak),
    #   biases  -> f32 (1, d_out_pad) lane rows.
    # Zero padding keeps the math exact: padded rows/cols contribute 0 and
    # padded bias entries are 0, so padded lanes stay 0 through LeakyReLU.
    params = []
    for i, (w, b) in enumerate(zip(weights, biases)):
        di, do = dims_pad[i], dims_pad[i + 1]
        w_p = jnp.zeros((di, do), jnp.bfloat16)
        w_p = w_p.at[: w.shape[0], : w.shape[1]].set(w.astype(jnp.bfloat16))
        b_p = jnp.zeros((1, do), jnp.float32)
        b_p = b_p.at[0, : b.shape[0]].set(b.astype(jnp.float32))
        params.append(w_p)
        params.append(b_p)

    weight_bytes = sum(int(p.size) * p.dtype.itemsize for p in params)

    # ---- Per-generation VMEM budget ----------------------------------------
    try:
        vmem_cap = int(pltpu.get_tpu_info().vmem_capacity_bytes)
    except Exception:  # pragma: no cover — conservative fallback (v7x per-TC)
        vmem_cap = 64 << 20
    budget = (vmem_cap * 3) // 4          # ~48 MiB on v7x, ~96 MiB on v5e/v6e

    # Pallas allocates 2 buffers per input even with a constant index_map, so
    # the real resident parameter footprint is 2x weight_bytes.
    resident = 2 * weight_bytes
    per_row_bytes = (2 * dims_pad[0] * 2        # bf16 input tile, double-buffered
                     + 2 * dims_pad[-1] * 4     # f32 output tile, double-buffered
                     + 4 * max(dims_pad) * 4)   # f32 intermediates headroom
    rows_that_fit = max(8, (budget - resident - (2 << 20)) // per_row_bytes)

    tile = _pick_tile(B, rows_that_fit, max_tile_b)
    B_pad = _round_up(B, tile)

    vmem_estimate = resident + tile * per_row_bytes + (2 << 20)
    vmem_limit = int(min(max(2 * vmem_estimate, 16 << 20), budget))
    vmem_limit = max(vmem_limit, vmem_estimate)   # v5e default scoped is only 16 MiB

    # ---- Activation slab: bf16, row-padded only when needed -----------------
    x_b = x.astype(jnp.bfloat16)
    if B_pad != B or d_in_eff != d_in:
        x_in = jnp.zeros((B_pad, d_in_eff), jnp.bfloat16)
        x_in = x_in.at[:B, :d_in].set(x_b)
    else:
        x_in = x_b                                    # no extra pad pass

    kernel = functools.partial(_mlp_kernel, num_layers)

    in_specs = [pl.BlockSpec((tile, d_in_eff), lambda i: (i, 0))]
    for p in params:
        # Constant index_map -> parameter stays resident in VMEM across steps.
        in_specs.append(pl.BlockSpec(p.shape, lambda i: (0, 0)))
    out_specs = pl.BlockSpec((tile, dims_pad[-1]), lambda i: (i, 0))

    flops = 2 * B_pad * sum(dims_pad[i] * dims_pad[i + 1]
                            for i in range(num_layers))
    bytes_accessed = (B_pad * dims_pad[0] * 2            # bf16 input
                      + B_pad * dims_pad[-1] * x.dtype.itemsize
                      + weight_bytes)

    out = pl.pallas_call(
        kernel,
        out_shape=jax.ShapeDtypeStruct((B_pad, dims_pad[-1]), x.dtype),
        grid=(B_pad // tile,),
        in_specs=in_specs,
        out_specs=out_specs,
        compiler_params=pltpu.CompilerParams(
            dimension_semantics=("parallel",),
            vmem_limit_bytes=vmem_limit,
        ),
        cost_estimate=pl.CostEstimate(
            flops=flops, transcendentals=0, bytes_accessed=bytes_accessed),
    )(x_in, *params)

    out = out[:B, :d_out]
    if len(orig_shape) == 3:
        out = out.reshape(orig_shape[0], orig_shape[1], d_out)
    return out


def init_mlp_params(key, num_layers, hidden_size, input_size, output_size):
    """Deterministic init matching nn.Linear default: U(-1/sqrt(fan_in), 1/sqrt(fan_in)).
    Weights are stored pre-transposed as (fan_in, fan_out)."""
    if num_layers == 1:
        dims = [(input_size, output_size)]
    else:
        dims = [(input_size, hidden_size)]
        dims += [(hidden_size, hidden_size)] * (num_layers - 2)
        dims += [(hidden_size, output_size)]

    weights, biases = [], []
    for (fan_in, fan_out) in dims:
        key, kw, kb = jax.random.split(key, 3)
        bound = 1.0 / jnp.sqrt(jnp.float32(fan_in))
        w = jax.random.uniform(kw, (fan_in, fan_out), jnp.float32, -bound, bound)
        b = jax.random.uniform(kb, (fan_out,), jnp.float32, -bound, bound)
        weights.append(w)
        biases.append(b)
    return weights, biases


def mlp_reference(x, weights, biases):
    """Pure-JAX f32 reference of the PyTorch forward (batch_norm=False)."""
    h = x
    n = len(weights)
    for i in range(n - 1):
        h = h @ weights[i] + biases[i]
        h = jnp.where(h > 0, h, LEAKY_SLOPE * h)
    return h @ weights[-1] + biases[-1]


if __name__ == "__main__":
    key = jax.random.PRNGKey(0)

    num_layers, hidden_size, input_size, output_size = 3, 32, 16, 8
    batch = 8

    k_params, k_x, k_x3 = jax.random.split(key, 3)
    weights, biases = init_mlp_params(
        k_params, num_layers, hidden_size, input_size, output_size
    )

    # 2D path
    x = jax.random.normal(k_x, (batch, input_size), jnp.float32)
    out = jax.block_until_ready(mlp_forward(x, weights, biases))
    ref = mlp_reference(x, weights, biases)
    assert out.shape == (batch, output_size)
    # bf16 MXU operands / bf16 activation I/O vs f32 reference -> looser tolerance.
    assert jnp.allclose(out, ref, atol=1e-2, rtol=1e-2), "2D mismatch vs reference"

    # 3D path (batch_norm=False => identical per-row math, flattened in wrapper)
    x3 = jax.random.normal(k_x3, (2, 5, input_size), jnp.float32)
    out3 = jax.block_until_ready(mlp_forward(x3, weights, biases))
    ref3 = mlp_reference(x3, weights, biases)
    assert out3.shape == (2, 5, output_size)
    assert jnp.allclose(out3, ref3, atol=1e-2, rtol=1e-2), "3D mismatch vs reference"

    # TODO(synk): batch_norm=True path (BatchNorm1d running stats / train-vs-eval
    # toggling) is not implemented; module default batch_norm=False is covered.
    print("KERNEL_OK")
</pallas_src>

<mosaic_0001>
module attributes {stable_mosaic.version = 11 : i64} {
  func.func @_mlp_kernel(%arg0: i32, %arg1: memref<8x16xbf16, #tpu.memory_space<vmem>>, %arg2: memref<16x128xbf16, #tpu.memory_space<vmem>>, %arg3: memref<1x128xf32, #tpu.memory_space<vmem>>, %arg4: memref<128x128xbf16, #tpu.memory_space<vmem>>, %arg5: memref<1x128xf32, #tpu.memory_space<vmem>>, %arg6: memref<128x128xbf16, #tpu.memory_space<vmem>>, %arg7: memref<1x128xf32, #tpu.memory_space<vmem>>, %arg8: memref<8x128xf32, #tpu.memory_space<vmem>>) attributes {dimension_semantics = [#tpu.dimension_semantics<parallel>], iteration_bounds = array<i64: 1>, scalar_prefetch = 0 : i64, scratch_operands = 0 : i64, tpu.core_type = #tpu.core_type<tc>, window_params = [{transform_indices = @transform_0, window_bounds = array<i64: 8, 16>}, {pipeline_mode = #tpu.pipeline_mode<synchronous>, transform_indices = @transform_1, window_bounds = array<i64: 16, 128>}, {pipeline_mode = #tpu.pipeline_mode<synchronous>, transform_indices = @transform_2, window_bounds = array<i64: 1, 128>}, {pipeline_mode = #tpu.pipeline_mode<synchronous>, transform_indices = @transform_3, window_bounds = array<i64: 128, 128>}, {pipeline_mode = #tpu.pipeline_mode<synchronous>, transform_indices = @transform_4, window_bounds = array<i64: 1, 128>}, {pipeline_mode = #tpu.pipeline_mode<synchronous>, transform_indices = @transform_5, window_bounds = array<i64: 128, 128>}, {pipeline_mode = #tpu.pipeline_mode<synchronous>, transform_indices = @transform_6, window_bounds = array<i64: 1, 128>}, {transform_indices = @transform_7, window_bounds = array<i64: 8, 128>}]} {
    %c0 = arith.constant 0 : index
    %c0_0 = arith.constant 0 : index
    %0 = vector.load %arg1[%c0, %c0_0] : memref<8x16xbf16, #tpu.memory_space<vmem>>, vector<8x16xbf16>
    %c0_1 = arith.constant 0 : index
    %c0_2 = arith.constant 0 : index
    %1 = vector.load %arg2[%c0_1, %c0_2] : memref<16x128xbf16, #tpu.memory_space<vmem>>, vector<16x128xbf16>
    %c0_3 = arith.constant 0 : index
    %c0_4 = arith.constant 0 : index
    %2 = vector.load %arg3[%c0_3, %c0_4] : memref<1x128xf32, #tpu.memory_space<vmem>>, vector<1x128xf32>
    %cst = arith.constant dense<0.000000e+00> : vector<8x128xf32>
    %3 = tpu.matmul %0, %1, %cst {dimension_numbers = #tpu.dot_dimension_numbers<[1], [0], [0], [1], [0, 0, 1, 1], [], []>} : vector<8x16xbf16>, vector<16x128xbf16>, vector<8x128xf32> -> vector<8x128xf32>
    %4 = vector.broadcast %2 : vector<1x128xf32> to vector<8x128xf32>
    %5 = arith.addf %3, %4 : vector<8x128xf32>
    %cst_5 = arith.constant 0.000000e+00 : f32
    %6 = vector.broadcast %cst_5 : f32 to vector<8x128xf32>
    %7 = arith.cmpf ogt, %5, %6 : vector<8x128xf32>
    %cst_6 = arith.constant 0.00999999977 : f32
    %8 = vector.broadcast %cst_6 : f32 to vector<8x128xf32>
    %9 = arith.mulf %8, %5 : vector<8x128xf32>
    %10 = arith.select %7, %5, %9 : vector<8x128xi1>, vector<8x128xf32>
    %c0_7 = arith.constant 0 : index
    %c0_8 = arith.constant 0 : index
    %11 = vector.load %arg4[%c0_7, %c0_8] : memref<128x128xbf16, #tpu.memory_space<vmem>>, vector<128x128xbf16>
    %c0_9 = arith.constant 0 : index
    %c0_10 = arith.constant 0 : index
    %12 = vector.load %arg5[%c0_9, %c0_10] : memref<1x128xf32, #tpu.memory_space<vmem>>, vector<1x128xf32>
    %13 = arith.truncf %10 : vector<8x128xf32> to vector<8x128xbf16>
    %cst_11 = arith.constant dense<0.000000e+00> : vector<8x128xf32>
    %14 = tpu.matmul %13, %11, %cst_11 {dimension_numbers = #tpu.dot_dimension_numbers<[1], [0], [0], [1], [0, 0, 1, 1], [], []>} : vector<8x128xbf16>, vector<128x128xbf16>, vector<8x128xf32> -> vector<8x128xf32>
    %15 = vector.broadcast %12 : vector<1x128xf32> to vector<8x128xf32>
    %16 = arith.addf %14, %15 : vector<8x128xf32>
    %cst_12 = arith.constant 0.000000e+00 : f32
    %17 = vector.broadcast %cst_12 : f32 to vector<8x128xf32>
    %18 = arith.cmpf ogt, %16, %17 : vector<8x128xf32>
    %cst_13 = arith.constant 0.00999999977 : f32
    %19 = vector.broadcast %cst_13 : f32 to vector<8x128xf32>
    %20 = arith.mulf %19, %16 : vector<8x128xf32>
    %21 = arith.select %18, %16, %20 : vector<8x128xi1>, vector<8x128xf32>
    %c0_14 = arith.constant 0 : index
    %c0_15 = arith.constant 0 : index
    %22 = vector.load %arg6[%c0_14, %c0_15] : memref<128x128xbf16, #tpu.memory_space<vmem>>, vector<128x128xbf16>
    %c0_16 = arith.constant 0 : index
    %c0_17 = arith.constant 0 : index
    %23 = vector.load %arg7[%c0_16, %c0_17] : memref<1x128xf32, #tpu.memory_space<vmem>>, vector<1x128xf32>
    %24 = arith.truncf %21 : vector<8x128xf32> to vector<8x128xbf16>
    %cst_18 = arith.constant dense<0.000000e+00> : vector<8x128xf32>
    %25 = tpu.matmul %24, %22, %cst_18 {dimension_numbers = #tpu.dot_dimension_numbers<[1], [0], [0], [1], [0, 0, 1, 1], [], []>} : vector<8x128xbf16>, vector<128x128xbf16>, vector<8x128xf32> -> vector<8x128xf32>
    %26 = vector.broadcast %23 : vector<1x128xf32> to vector<8x128xf32>
    %27 = arith.addf %25, %26 : vector<8x128xf32>
    %c0_19 = arith.constant 0 : index
    %c0_20 = arith.constant 0 : index
    %28 = vector.load %arg8[%c0_19, %c0_20] : memref<8x128xf32, #tpu.memory_space<vmem>>, vector<8x128xf32>
    tpu.vector_store %arg8[%c0_19, %c0_20], %27 {strides = array<i32>} : memref<8x128xf32, #tpu.memory_space<vmem>>, vector<8x128xf32>,
    return
  }
  func.func @transform_0(%arg0: i32) -> (i32, i32) {
    %c0_i32 = arith.constant 0 : i32
    %c0_i32_0 = arith.constant 0 : i32
    return %arg0, %c0_i32 : i32, i32
  }
  func.func @transform_1(%arg0: i32) -> (i32, i32) {
    %c0_i32 = arith.constant 0 : i32
    %c0_i32_0 = arith.constant 0 : i32
    %c0_i32_1 = arith.constant 0 : i32
    return %c0_i32, %c0_i32_0 : i32, i32
  }
  func.func @transform_2(%arg0: i32) -> (i32, i32) {
    %c0_i32 = arith.constant 0 : i32
    %c0_i32_0 = arith.constant 0 : i32
    %c0_i32_1 = arith.constant 0 : i32
    return %c0_i32, %c0_i32_0 : i32, i32
  }
  func.func @transform_3(%arg0: i32) -> (i32, i32) {
    %c0_i32 = arith.constant 0 : i32
    %c0_i32_0 = arith.constant 0 : i32
    %c0_i32_1 = arith.constant 0 : i32
    return %c0_i32, %c0_i32_0 : i32, i32
  }
  func.func @transform_4(%arg0: i32) -> (i32, i32) {
    %c0_i32 = arith.constant 0 : i32
    %c0_i32_0 = arith.constant 0 : i32
    %c0_i32_1 = arith.constant 0 : i32
    return %c0_i32, %c0_i32_0 : i32, i32
  }
  func.func @transform_5(%arg0: i32) -> (i32, i32) {
    %c0_i32 = arith.constant 0 : i32
    %c0_i32_0 = arith.constant 0 : i32
    %c0_i32_1 = arith.constant 0 : i32
    return %c0_i32, %c0_i32_0 : i32, i32
  }
  func.func @transform_6(%arg0: i32) -> (i32, i32) {
    %c0_i32 = arith.constant 0 : i32
    %c0_i32_0 = arith.constant 0 : i32
    %c0_i32_1 = arith.constant 0 : i32
    return %c0_i32, %c0_i32_0 : i32, i32
  }
  func.func @transform_7(%arg0: i32) -> (i32, i32) {
    %c0_i32 = arith.constant 0 : i32
    %c0_i32_0 = arith.constant 0 : i32
    return %arg0, %c0_i32 : i32, i32
  }
}

</mosaic_0001>

<llo_original>
// kernel: tpu_custom_call.1
$region0: #{tpu_custom_call.1}
  #allocation0 [shape = 'u32[]', space=smem, size = 0x4, offset = 0x4, fixed_abs, tag = 'smem constant byte address 0x4 - core index']
  #allocation1 [shape = 'u32[144,128]{1,0:T(1,128)}', space=vmem, size = 0x12000, scoped, tag = 'internal scratch']
  %s0 = inlined_call_operand.hbm [shape: bf16[8,16], index: 0, kind: input, shape index: {}]
  %s1 = inlined_call_operand.hbm [shape: bf16[16,128], index: 1, kind: input, shape index: {}]
  %s2 = inlined_call_operand.vmem [shape: f32[1,128], index: 2, kind: input, shape index: {}]
  %s3 = inlined_call_operand.hbm [shape: bf16[128,128], index: 3, kind: input, shape index: {}]
  %s4 = inlined_call_operand.vmem [shape: f32[1,128], index: 4, kind: input, shape index: {}]
  %s5 = inlined_call_operand.hbm [shape: bf16[128,128], index: 5, kind: input, shape index: {}]
  %s6 = inlined_call_operand.vmem [shape: f32[1,128], index: 6, kind: input, shape index: {}]
  %s7 = inlined_call_operand.hbm [shape: f32[8,128], index: 7, kind: output, shape index: {}]
  %s8 = sld [smem:[#allocation0]]
  $region54: #{tpu_custom_call.1} parent=0
    _
  %s10 = ssub.s32 1, %s8
  %s11 = scalar_select 0, %s10, %s8
  $region1: #{tpu_custom_call.1} parent=0
    #allocation2 [shape = 'u8[2048]{0}', space=vmem, size = 0x800, scoped, tag = 'input window, operand 0, single buffered']
    #allocation3 [shape = 's32[1]{0}', space=sflag, size = 0x4, scoped, tag = 'scoped memory for tpu_custom_call.1']
    #allocation4 [shape = 's32[1]{0}', space=sflag, size = 0x4, scoped, tag = 'scoped memory for tpu_custom_call.1']
    #allocation5 [shape = 'u8[4096]{0}', space=vmem, size = 0x1000, scoped, tag = 'input window, operand 1, single buffered']
    #allocation6 [shape = 's32[1]{0}', space=sflag, size = 0x4, scoped, tag = 'scoped memory for tpu_custom_call.1']
    #allocation7 [shape = 'u8[32768]{0}', space=vmem, size = 0x8000, scoped, tag = 'input window, operand 3, single buffered']
    #allocation8 [shape = 'u8[32768]{0}', space=vmem, size = 0x8000, scoped, tag = 'input window, operand 5, single buffered']
    #allocation9 [shape = 's32[1]{0}', space=sflag, size = 0x4, scoped, tag = 'scoped memory for tpu_custom_call.1']
    #allocation10 [shape = 'u8[4096]{0}', space=vmem, size = 0x1000, scoped, tag = 'output window, operand 0, single buffered']
    %12 = vsyncpa [#allocation3], 0
    %13 = vsyncpa [#allocation6], 0
    %14 = vsyncpa [#allocation9], 0
    %15 = vsyncpa [#allocation4], 0
    // Predicated region
    $region2: #{tpu_custom_call.1} parent=1 // pred_check
      _
    $region3: #{tpu_custom_call.1} parent=1 // pred_check_branch
      %17 = sbr.rel (0) target = $region5
    $region4: #{tpu_custom_call.1} parent=1 // pred_region
      %s19 = ssub.s32 64, 64
      %20 = vsyncadd [#allocation3], %s19
      %s22 = sshll.u32 [#allocation2], 4
      %s23 = int_to_ptr.vmem [resolvable:$true] %s22
      %25 = dma.hbm_to_vmem [thread:$0]  %s0, 64, %s23, [#allocation3]
    $region5: #{tpu_custom_call.1} parent=1 // pred_fallthru
      _
    // Predicated region
    $region6: #{tpu_custom_call.1} parent=1 // pred_check
      _
    $region7: #{tpu_custom_call.1} parent=1 // pred_check_branch
      %27 = sbr.rel (0) target = $region9
    $region8: #{tpu_custom_call.1} parent=1 // pred_region
      %s29 = ssub.s32 128, 128
      %30 = vsyncadd [#allocation6], %s29
      %s31 = sshll.u32 [#allocation5], 4
      %s32 = int_to_ptr.vmem [resolvable:$true] %s31
      %37 = dma.hbm_to_vmem [thread:$0]  %s1, 128, %s32, [#allocation6], 64, 64, 4
    $region9: #{tpu_custom_call.1} parent=1 // pred_fallthru
      _
    // Predicated region
    $region10: #{tpu_custom_call.1} parent=1 // pred_check
      _
    $region11: #{tpu_custom_call.1} parent=1 // pred_check_branch
      %39 = sbr.rel (0) target = $region13
    $region12: #{tpu_custom_call.1} parent=1 // pred_region
      _
    $region13: #{tpu_custom_call.1} parent=1 // pred_fallthru
      _
    // Predicated region
    $region14: #{tpu_custom_call.1} parent=1 // pred_check
      _
    $region15: #{tpu_custom_call.1} parent=1 // pred_check_branch
      %41 = sbr.rel (0) target = $region17
    $region16: #{tpu_custom_call.1} parent=1 // pred_region
      %s43 = ssub.s32 1024, 1024
      %44 = vsyncadd [#allocation6], %s43
      %s45 = sshll.u32 [#allocation7], 4
      %s46 = int_to_ptr.vmem [resolvable:$true] %s45
      %51 = dma.hbm_to_vmem [thread:$0]  %s3, 1024, %s46, [#allocation6], 64, 64, 4
    $region17: #{tpu_custom_call.1} parent=1 // pred_fallthru
      _
    // Predicated region
    $region18: #{tpu_custom_call.1} parent=1 // pred_check
      _
    $region19: #{tpu_custom_call.1} parent=1 // pred_check_branch
      %53 = sbr.rel (0) target = $region21
    $region20: #{tpu_custom_call.1} parent=1 // pred_region
      _
    $region21: #{tpu_custom_call.1} parent=1 // pred_fallthru
      _
    // Predicated region
    $region22: #{tpu_custom_call.1} parent=1 // pred_check
      _
    $region23: #{tpu_custom_call.1} parent=1 // pred_check_branch
      %55 = sbr.rel (0) target = $region25
    $region24: #{tpu_custom_call.1} parent=1 // pred_region
      %s57 = ssub.s32 1024, 1024
      %58 = vsyncadd [#allocation9], %s57
      %s59 = sshll.u32 [#allocation8], 4
      %s60 = int_to_ptr.vmem [resolvable:$true] %s59
      %65 = dma.hbm_to_vmem [thread:$0]  %s5, 1024, %s60, [#allocation9], 64, 64, 4
    $region25: #{tpu_custom_call.1} parent=1 // pred_fallthru
      _
    // Predicated region
    $region26: #{tpu_custom_call.1} parent=1 // pred_check
      _
    $region27: #{tpu_custom_call.1} parent=1 // pred_check_branch
      %67 = sbr.rel (0) target = $region29
    $region28: #{tpu_custom_call.1} parent=1 // pred_region
      _
    $region29: #{tpu_custom_call.1} parent=1 // pred_fallthru
      _
    // Predicated region
    $region30: #{tpu_custom_call.1} parent=1 // pred_check
      _
    $region31: #{tpu_custom_call.1} parent=1 // pred_check_branch
      %69 = sbr.rel (0) target = $region33
    $region32: #{tpu_custom_call.1} parent=1 // pred_region
      %70 = dma.done [#allocation3], 64
    $region33: #{tpu_custom_call.1} parent=1 // pred_fallthru
      _
    // Predicated region
    $region34: #{tpu_custom_call.1} parent=1 // pred_check
      _
    $region35: #{tpu_custom_call.1} parent=1 // pred_check_branch
      %72 = sbr.rel (0) target = $region37
    $region36: #{tpu_custom_call.1} parent=1 // pred_region
      %73 = dma.done [#allocation6], 128
    $region37: #{tpu_custom_call.1} parent=1 // pred_fallthru
      _
    // Predicated region
    $region38: #{tpu_custom_call.1} parent=1 // pred_check
      _
    $region39: #{tpu_custom_call.1} parent=1 // pred_check_branch
      %75 = sbr.rel (0) target = $region41
    $region40: #{tpu_custom_call.1} parent=1 // pred_region
      %76 = dma.done [#allocation6], 1024
    $region41: #{tpu_custom_call.1} parent=1 // pred_fallthru
      _
    // Predicated region
    $region42: #{tpu_custom_call.1} parent=1 // pred_check
      _
    $region43: #{tpu_custom_call.1} parent=1 // pred_check_branch
      %78 = sbr.rel (0) target = $region45
    $region44: #{tpu_custom_call.1} parent=1 // pred_region
      %79 = dma.done [#allocation9], 1024
    $region45: #{tpu_custom_call.1} parent=1 // pred_fallthru
      _
    %v81 = vld [vmem:[#allocation2] sm:$0xf]
    %v82 = vld [vmem:[#allocation5] sm:$0xf]
    %v83 = vld [vmem:[#allocation5 + $0x4] sm:$0xf]
    %v84 = vld [vmem:[%s2] sm:$0x1]
    %v86 = vlaneseq
    %v87 = vshrl.u32 %v86, 7
    %v88 = vsub.s32 0, %v87
    %v89 = vrot.slane %v84, %v88
    %v93 = vunpack.c.l.b16 %v82
    %v94 = vunpack.c.l.b16 %v83
    %v95 = vpack.c.b16 %v94, %v93
    %vm97 = vcmask 130048
    %v99 = vsel %vm97, %v81, 0
    %101 = vmatprep.subr.bf16.mxu0 0
    %102 = vmatpush1.bf16.msra.mxu0 %v95
    %103 = vmatprep.subr.bf16.mxu0 0
    %104 = vmatpush1.bf16.msra.mxu0 0
    %105 = vmatprep.subr.bf16.mxu0 0
    %106 = vmatpush1.bf16.msra.mxu0 0
    %107 = vmatprep.subr.bf16.mxu0 0
    %108 = vmatpush1.bf16.msra.mxu0 0
    %109 = vmatprep.subr.bf16.mxu0 0
    %110 = vmatpush1.bf16.msra.mxu0 0
    %111 = vmatprep.subr.bf16.mxu0 0
    %112 = vmatpush1.bf16.msra.mxu0 0
    %113 = vmatprep.subr.bf16.mxu0 0
    %114 = vmatpush1.bf16.msra.mxu0 0
    %115 = vmatprep.subr.bf16.mxu0 0
    %116 = vmatpush1.bf16.msra.mxu0 0
    %117 = vmatprep.subr.bf16.mxu0 0
    %118 = vmatpush1.bf16.msra.mxu0 0
    %119 = vmatprep.subr.bf16.mxu0 0
    %120 = vmatpush1.bf16.msra.mxu0 0
    %121 = vmatprep.subr.bf16.mxu0 0
    %122 = vmatpush1.bf16.msra.mxu0 0
    %123 = vmatprep.subr.bf16.mxu0 0
    %124 = vmatpush1.bf16.msra.mxu0 0
    %125 = vmatprep.subr.bf16.mxu0 0
    %126 = vmatpush1.bf16.msra.mxu0 0
    %127 = vmatprep.subr.bf16.mxu0 0
    %128 = vmatpush1.bf16.msra.mxu0 0
    %129 = vmatprep.subr.bf16.mxu0 0
    %130 = vmatpush1.bf16.msra.mxu0 0
    %131 = vmatprep.subr.bf16.mxu0 0
    %132 = vmatpush1.bf16.msra.mxu0 0
    %133 = vmatprep.mubr.bf16.mxu0 0
    %134 = vmatmul.mubr.bf16.gmra.mrb[0].mxu0 %v99
    %v135 = vpop.f32.mrb[0].mxu0
    %v136 = vadd.f32 %v89, %v135
    %v137 = vpop.f32.mrb[0].mxu0
    %v138 = vpop.f32.mrb[0].mxu0
    %v139 = vpop.f32.mrb[0].mxu0
    %140 = vdwg.mxu0
    %vm141 = vcmp.gt.f32.partialorder %v136, 0.0
    %v142 = vmul.f32 %v136, 0.01
    %v143 = vsel %vm141, %v136, %v142
    %v144 = vld [vmem:[#allocation7] sm:$0xf]
    %v145 = vld [vmem:[#allocation7 + $0x4] sm:$0xf]
    %v146 = vld [vmem:[#allocation7 + $0x8] sm:$0xf]
    %v147 = vld [vmem:[#allocation7 + $0xc] sm:$0xf]
    %v148 = vld [vmem:[#allocation7 + $0x10] sm:$0xf]
    %v149 = vld [vmem:[#allocation7 + $0x14] sm:$0xf]
    %v150 = vld [vmem:[#allocation7 + $0x18] sm:$0xf]
    %v151 = vld [vmem:[#allocation7 + $0x1c] sm:$0xf]
    %v152 = vld [vmem:[#allocation7 + $0x20] sm:$0xf]
    %v153 = vld [vmem:[#allocation7 + $0x24] sm:$0xf]
    %v154 = vld [vmem:[#allocation7 + $0x28] sm:$0xf]
    %v155 = vld [vmem:[#allocation7 + $0x2c] sm:$0xf]
    %v156 = vld [vmem:[#allocation7 + $0x30] sm:$0xf]
    %v157 = vld [vmem:[#allocation7 + $0x34] sm:$0xf]
    %v158 = vld [vmem:[#allocation7 + $0x38] sm:$0xf]
    %v159 = vld [vmem:[#allocation7 + $0x3c] sm:$0xf]
    %v160 = vld [vmem:[%s4] sm:$0x1]
    %v161 = vpack.c.bf16 %v143, %v143
    %v163 = vlaneseq
    %v164 = vshrl.u32 %v163, 7
    %v165 = vsub.s32 0, %v164
    %v166 = vrot.slane %v160, %v165
    %v184 = vunpack.c.l.b16 %v144
    %v185 = vunpack.c.l.b16 %v145
    %v186 = vunpack.c.l.b16 %v146
    %v187 = vunpack.c.l.b16 %v147
    %v188 = vunpack.c.l.b16 %v148
    %v189 = vunpack.c.l.b16 %v149
    %v190 = vunpack.c.l.b16 %v150
    %v191 = vunpack.c.l.b16 %v151
    %v192 = vunpack.c.l.b16 %v152
    %v193 = vunpack.c.l.b16 %v153
    %v194 = vunpack.c.l.b16 %v154
    %v195 = vunpack.c.l.b16 %v155
    %v196 = vunpack.c.l.b16 %v156
    %v197 = vunpack.c.l.b16 %v157
    %v198 = vunpack.c.l.b16 %v158
    %v199 = vunpack.c.l.b16 %v159
    %v200 = vpack.c.b16 %v185, %v184
    %v201 = vpack.c.b16 %v187, %v186
    %v202 = vpack.c.b16 %v189, %v188
    %v203 = vpack.c.b16 %v191, %v190
    %v204 = vpack.c.b16 %v193, %v192
    %v205 = vpack.c.b16 %v195, %v194
    %v206 = vpack.c.b16 %v197, %v196
    %v207 = vpack.c.b16 %v199, %v198
    %216 = vmatprep.subr.bf16.mxu0 0
    %217 = vmatpush1.bf16.msra.mxu0 %v200
    %218 = vmatprep.subr.bf16.mxu0 0
    %219 = vmatpush1.bf16.msra.mxu0 %v201
    %220 = vmatprep.subr.bf16.mxu0 0
    %221 = vmatpush1.bf16.msra.mxu0 %v202
    %222 = vmatprep.subr.bf16.mxu0 0
    %223 = vmatpush1.bf16.msra.mxu0 %v203
    %224 = vmatprep.subr.bf16.mxu0 0
    %225 = vmatpush1.bf16.msra.mxu0 %v204
    %226 = vmatprep.subr.bf16.mxu0 0
    %227 = vmatpush1.bf16.msra.mxu0 %v205
    %228 = vmatprep.subr.bf16.mxu0 0
    %229 = vmatpush1.bf16.msra.mxu0 %v206
    %230 = vmatprep.subr.bf16.mxu0 0
    %231 = vmatpush1.bf16.msra.mxu0 %v207
    %232 = vmatprep.subr.bf16.mxu0 0
    %233 = vmatpush1.bf16.msra.mxu0 0
    %234 = vmatprep.subr.bf16.mxu0 0
    %235 = vmatpush1.bf16.msra.mxu0 0
    %236 = vmatprep.subr.bf16.mxu0 0
    %237 = vmatpush1.bf16.msra.mxu0 0
    %238 = vmatprep.subr.bf16.mxu0 0
    %239 = vmatpush1.bf16.msra.mxu0 0
    %240 = vmatprep.subr.bf16.mxu0 0
    %241 = vmatpush1.bf16.msra.mxu0 0
    %242 = vmatprep.subr.bf16.mxu0 0
    %243 = vmatpush1.bf16.msra.mxu0 0
    %244 = vmatprep.subr.bf16.mxu0 0
    %245 = vmatpush1.bf16.msra.mxu0 0
    %246 = vmatprep.subr.bf16.mxu0 0
    %247 = vmatpush1.bf16.msra.mxu0 0
    %248 = vmatprep.mubr.bf16.mxu0 0
    %249 = vmatmul.mubr.bf16.gmra.mrb[0].mxu0 %v161
    %v250 = vpop.f32.mrb[0].mxu0
    %v251 = vadd.f32 %v166, %v250
    %v252 = vpop.f32.mrb[0].mxu0
    %v253 = vpop.f32.mrb[0].mxu0
    %v254 = vpop.f32.mrb[0].mxu0
    %255 = vdwg.mxu0
    %vm256 = vcmp.gt.f32.partialorder %v251, 0.0
    %v257 = vmul.f32 %v251, 0.01
    %v258 = vsel %vm256, %v251, %v257
    %v259 = vld [vmem:[#allocation8] sm:$0xf]
    %v260 = vld [vmem:[#allocation8 + $0x4] sm:$0xf]
    %v261 = vld [vmem:[#allocation8 + $0x8] sm:$0xf]
    %v262 = vld [vmem:[#allocation8 + $0xc] sm:$0xf]
    %v263 = vld [vmem:[#allocation8 + $0x10] sm:$0xf]
    %v264 = vld [vmem:[#allocation8 + $0x14] sm:$0xf]
    %v265 = vld [vmem:[#allocation8 + $0x18] sm:$0xf]
    %v266 = vld [vmem:[#allocation8 + $0x1c] sm:$0xf]
    %v267 = vld [vmem:[#allocation8 + $0x20] sm:$0xf]
    %v268 = vld [vmem:[#allocation8 + $0x24] sm:$0xf]
    %v269 = vld [vmem:[#allocation8 + $0x28] sm:$0xf]
    %v270 = vld [vmem:[#allocation8 + $0x2c] sm:$0xf]
    %v271 = vld [vmem:[#allocation8 + $0x30] sm:$0xf]
    %v272 = vld [vmem:[#allocation8 + $0x34] sm:$0xf]
    %v273 = vld [vmem:[#allocation8 + $0x38] sm:$0xf]
    %v274 = vld [vmem:[#allocation8 + $0x3c] sm:$0xf]
    %v275 = vld [vmem:[%s6] sm:$0x1]
    %v276 = vpack.c.bf16 %v258, %v258
    %v278 = vlaneseq
    %v279 = vshrl.u32 %v278, 7
    %v280 = vsub.s32 0, %v279
    %v281 = vrot.slane %v275, %v280
    %v299 = vunpack.c.l.b16 %v259
    %v300 = vunpack.c.l.b16 %v260
    %v301 = vunpack.c.l.b16 %v261
    %v302 = vunpack.c.l.b16 %v262
    %v303 = vunpack.c.l.b16 %v263
    %v304 = vunpack.c.l.b16 %v264
    %v305 = vunpack.c.l.b16 %v265
    %v306 = vunpack.c.l.b16 %v266
    %v307 = vunpack.c.l.b16 %v267
    %v308 = vunpack.c.l.b16 %v268
    %v309 = vunpack.c.l.b16 %v269
    %v310 = vunpack.c.l.b16 %v270
    %v311 = vunpack.c.l.b16 %v271
    %v312 = vunpack.c.l.b16 %v272
    %v313 = vunpack.c.l.b16 %v273
    %v314 = vunpack.c.l.b16 %v274
    %v315 = vpack.c.b16 %v300, %v299
    %v316 = vpack.c.b16 %v302, %v301
    %v317 = vpack.c.b16 %v304, %v303
    %v318 = vpack.c.b16 %v306, %v305
    %v319 = vpack.c.b16 %v308, %v307
    %v320 = vpack.c.b16 %v310, %v309
    %v321 = vpack.c.b16 %v312, %v311
    %v322 = vpack.c.b16 %v314, %v313
    %331 = vmatprep.subr.bf16.mxu0 0
    %332 = vmatpush1.bf16.msra.mxu0 %v315
    %333 = vmatprep.subr.bf16.mxu0 0
    %334 = vmatpush1.bf16.msra.mxu0 %v316
    %335 = vmatprep.subr.bf16.mxu0 0
    %336 = vmatpush1.bf16.msra.mxu0 %v317
    %337 = vmatprep.subr.bf16.mxu0 0
    %338 = vmatpush1.bf16.msra.mxu0 %v318
    %339 = vmatprep.subr.bf16.mxu0 0
    %340 = vmatpush1.bf16.msra.mxu0 %v319
    %341 = vmatprep.subr.bf16.mxu0 0
    %342 = vmatpush1.bf16.msra.mxu0 %v320
    %343 = vmatprep.subr.bf16.mxu0 0
    %344 = vmatpush1.bf16.msra.mxu0 %v321
    %345 = vmatprep.subr.bf16.mxu0 0
    %346 = vmatpush1.bf16.msra.mxu0 %v322
    %347 = vmatprep.subr.bf16.mxu0 0
    %348 = vmatpush1.bf16.msra.mxu0 0
    %349 = vmatprep.subr.bf16.mxu0 0
    %350 = vmatpush1.bf16.msra.mxu0 0
    %351 = vmatprep.subr.bf16.mxu0 0
    %352 = vmatpush1.bf16.msra.mxu0 0
    %353 = vmatprep.subr.bf16.mxu0 0
    %354 = vmatpush1.bf16.msra.mxu0 0
    %355 = vmatprep.subr.bf16.mxu0 0
    %356 = vmatpush1.bf16.msra.mxu0 0
    %357 = vmatprep.subr.bf16.mxu0 0
    %358 = vmatpush1.bf16.msra.mxu0 0
    %359 = vmatprep.subr.bf16.mxu0 0
    %360 = vmatpush1.bf16.msra.mxu0 0
    %361 = vmatprep.subr.bf16.mxu0 0
    %362 = vmatpush1.bf16.msra.mxu0 0
    %363 = vmatprep.mubr.bf16.mxu0 0
    %364 = vmatmul.mubr.bf16.gmra.mrb[0].mxu0 %v276
    %v365 = vpop.f32.mrb[0].mxu0
    %v366 = vadd.f32 %v281, %v365
    %v367 = vpop.f32.mrb[0].mxu0
    %v368 = vpop.f32.mrb[0].mxu0
    %v369 = vpop.f32.mrb[0].mxu0
    %370 = vdwg.mxu0
    %371 = vst [vmem:[#allocation10] sm:$0xff] %v366
    // Predicated region
    $region46: #{tpu_custom_call.1} parent=1 // pred_check
      _
    $region47: #{tpu_custom_call.1} parent=1 // pred_check_branch
      %373 = sbr.rel (0) target = $region49
    $region48: #{tpu_custom_call.1} parent=1 // pred_region
      %s375 = ssub.s32 128, 128
      %376 = vsyncadd [#allocation4], %s375
      %s378 = sshll.u32 [#allocation10], 4
      %s379 = int_to_ptr.vmem [resolvable:$true] %s378
      %381 = dma.vmem_to_hbm [thread:$0]  %s379, 128, %s7, [#allocation4]
    $region49: #{tpu_custom_call.1} parent=1 // pred_fallthru
      _
    // Predicated region
    $region50: #{tpu_custom_call.1} parent=1 // pred_check
      _
    $region51: #{tpu_custom_call.1} parent=1 // pred_check_branch
      %383 = sbr.rel (0) target = $region53
    $region52: #{tpu_custom_call.1} parent=1 // pred_region
      %384 = dma.done [#allocation4], 128
    $region53: #{tpu_custom_call.1} parent=1 // pred_fallthru
      _
    %385 = vsyncpa [#allocation3], 1
    %386 = vsyncpa [#allocation6], 1
    %387 = vsyncpa [#allocation9], 1
    %388 = vsyncpa [#allocation4], 1

</llo_original>
